<compile_context>
chip_gen: v7x
topology: tpu7x:2x2x1
jax: 0.10.0
libtpu: 0.0.40
codegen_flags: <defaults>
</compile_context>

<pallas_src>
import math

import jax
import jax.numpy as jnp
from jax.experimental import pallas as pl
from jax.experimental.pallas import tpu as pltpu


# ----------------------------------------------------------------------------
# Kernel body
# ----------------------------------------------------------------------------
def _imagenetx_kernel(x_ref, w_ref, b_ref, out_ref, acc_ref):
    # x_ref:   (b_bg, gc, b_hw)   packed image block (spatial on the lane axis)
    # w_ref:   (gc, g*n_pad)      folded, masked, block-diagonal classifier weight
    # b_ref:   (1,  g*n_pad)      folded classifier bias
    # out_ref: (b_bg, g*n_pad)    packed masked logits (written once per batch tile)
    # acc_ref: (b_bg, gc) f32     running spatial-sum accumulator (VMEM scratch)
    k = pl.program_id(1)

    @pl.when(k == 0)
    def _init():
        acc_ref[...] = jnp.zeros_like(acc_ref)

    # The only per-pixel work: a streaming lane reduce.  The upcast keeps
    # narrower (bf16) inputs legal while accumulating in f32 (no-op for f32).
    acc_ref[...] += jnp.sum(x_ref[...].astype(jnp.float32), axis=-1)

    @pl.when(k == pl.num_programs(1) - 1)
    def _finalize():
        out_ref[...] = (
            jnp.dot(acc_ref[...], w_ref[...], preferred_element_type=jnp.float32)
            + b_ref[...]
        )


# ----------------------------------------------------------------------------
# Host-side (trace-time) tiling / packing helpers
# ----------------------------------------------------------------------------
def _largest_aligned_divisor(n, limit, align):
    """Largest d with d | n, d <= limit, align | d; None if no such d exists."""
    best = None
    for d in range(align, min(n, limit) + 1, align):
        if n % d == 0:
            best = d
    return best


def _pick_batch_tile(bg, block_bg):
    # Output second-minor dim must be a multiple of 8 or the full extent.
    d = _largest_aligned_divisor(bg, block_bg, 8)
    return d if d is not None else bg


def _pick_hw_tile(hw, block_hw):
    # Lane-axis tile must be a multiple of 128 or the full extent.
    if hw <= block_hw:
        return hw
    d = _largest_aligned_divisor(hw, block_hw, 128)
    if d is None:
        return hw
    # Keep strided-DMA rows >= ~4 KiB (descriptor-bound otherwise), unless the
    # caller explicitly asked for tiny tiles (block_hw < 1024, e.g. the demo).
    if d < 1024 <= block_hw:
        return hw
    return d


def _choose_packing(batch, channels, block_bg):
    """Pick the sublane packing factor g (images per packed row group).

    Prefers >= 4 batch ('parallel') tiles so v7x's two TensorCores both get
    work; among equals prefers 8-aligned g*C (denser sublanes, less VMEM pad)."""
    g_aligned = 8 // math.gcd(channels, 8)
    best = None
    for g in sorted({g_aligned, 8, 4, 2, 1}, reverse=True):
        if batch % g != 0:
            continue
        bg = batch // g
        b_bg = _pick_batch_tile(bg, block_bg)
        n_par = bg // b_bg
        gc = g * channels
        score = (min(n_par, 4), 1 if gc % 8 == 0 else 0, gc)
        if best is None or score > best[0]:
            best = (score, g, bg, b_bg)
    _, g, bg, b_bg = best
    return g, bg, b_bg


# ----------------------------------------------------------------------------
# Forward builder: all folding / packing / tile search runs ONCE here.
# ----------------------------------------------------------------------------
def make_imagenetx_forward(mean, std, w, b, mask, x_shape, x_dtype=jnp.float32,
                           *, block_bg=8, block_hw=25088, vmem_limit_bytes=None):
    """Returns a jitted forward: x (B, C, H, W) -> (B, len(mask)) masked logits."""
    B, C, H, W = x_shape
    HW = H * W
    M = int(mask.shape[0])

    # ---- Fold normalize + 1/HW pool scale + class mask into W/b (host, once) ----
    inv_std = 1.0 / std
    w_eff = w * (inv_std / HW)[:, None]              # (C, NUM_CLASSES)
    b_eff = b - (mean * inv_std) @ w                 # (NUM_CLASSES,)
    w_m = jnp.take(w_eff, mask, axis=1)              # (C, M)   masked cols, mask order
    b_m = jnp.take(b_eff, mask, axis=0)              # (M,)

    # Pad masked columns to a lane-dense multiple of 128 (full unmasked vst).
    n_pad = max(((M + 127) // 128) * 128, 128)
    w_m = jnp.pad(w_m, ((0, 0), (0, n_pad - M)))
    b_m = jnp.pad(b_m, (0, n_pad - M))

    # ---- Pack g images on the sublane axis; keep the parallel axis >= 2 tiles ----
    g, bg, b_bg = _choose_packing(B, C, block_bg)
    gc = g * C
    w_blk = jnp.kron(jnp.eye(g, dtype=w_m.dtype), w_m)   # (gc, g*n_pad) block-diag
    b_blk = jnp.tile(b_m, g).reshape(1, g * n_pad)

    b_hw = _pick_hw_tile(HW, block_hw)
    grid = (bg // b_bg, HW // b_hw)   # batch (parallel), HW (reduction, last)

    # ---- VMEM budget: size the scoped limit to the actual buffers + headroom.
    # For the default (v7x-targeted) tiles this lands ~48 MiB -- well under v7x's
    # 64 MiB physical; it only grows toward 96+ MiB if v6e/v5e-sized tiles are
    # requested via block_hw / block_bg.
    dsize = jnp.dtype(x_dtype).itemsize
    gc_sub = -(-gc // 8) * 8
    bg_sub = -(-b_bg // 8) * 8
    need = (2 * b_bg * gc_sub * b_hw * dsize          # x double buffer
            + 2 * gc_sub * g * n_pad * 4              # W (resident, double-buffered)
            + 2 * 8 * g * n_pad * 4                   # b
            + 2 * bg_sub * g * n_pad * 4              # out double buffer
            + bg_sub * max(gc_sub, 128) * 4)          # acc scratch
    if vmem_limit_bytes is None:
        vmem_limit_bytes = int(min(max(need + 8 * 1024 * 1024, 32 * 1024 * 1024),
                                   112 * 1024 * 1024))

    # DMA-dominated custom call: tell XLA so it schedules around it properly.
    cost = pl.CostEstimate(
        flops=int(B * C * HW + 2 * bg * gc * g * n_pad),
        transcendentals=0,
        bytes_accessed=int(B * C * HW * dsize + w_blk.size * 4
                           + b_blk.size * 4 + bg * g * n_pad * 4),
    )

    call = pl.pallas_call(
        _imagenetx_kernel,
        out_shape=jax.ShapeDtypeStruct((bg, g * n_pad), jnp.float32),
        grid_spec=pltpu.PrefetchScalarGridSpec(
            num_scalar_prefetch=0,
            grid=grid,
            in_specs=[
                pl.BlockSpec((b_bg, gc, b_hw), lambda i, k: (i, 0, k)),   # x tiles
                # W/b are VMEM-resident (constant index maps).  For very large
                # masks, pipeline_mode=pl.Buffered(1) here would reclaim their
                # second buffer; negligible at these sizes so left at default.
                pl.BlockSpec((gc, g * n_pad), lambda i, k: (0, 0)),       # W
                pl.BlockSpec((1, g * n_pad), lambda i, k: (0, 0)),        # b
            ],
            out_specs=pl.BlockSpec((b_bg, g * n_pad), lambda i, k: (i, 0)),
            scratch_shapes=[pltpu.VMEM((b_bg, gc), jnp.float32)],
        ),
        compiler_params=pltpu.CompilerParams(
            dimension_semantics=("parallel", "arbitrary"),
            vmem_limit_bytes=vmem_limit_bytes,
        ),
        cost_estimate=cost,
    )

    @jax.jit
    def forward(x_nchw):
        # (B, C, H, W) -> (bg, gc, HW) is a contiguous, free reshape.
        x_packed = x_nchw.reshape(bg, gc, HW)
        out_packed = call(x_packed, w_blk, b_blk)
        # (bg, g*n_pad) -> (B, n_pad) free reshape; drop lane padding.
        # Columns are already in mask order.
        return out_packed.reshape(B, n_pad)[:, :M]

    return forward


if __name__ == "__main__":
    B, C, H, W = 2, 4, 16, 16
    NUM_CLASSES = 32

    key = jax.random.PRNGKey(0)
    kx, km, ks, kw, kb = jax.random.split(key, 5)

    x = jax.random.uniform(kx, (B, C, H, W), dtype=jnp.float32)

    # Deterministic synthetic parameters (normalize stats + classifier head).
    # TODO(synk): the real wrapper wraps an arbitrary backbone; only the
    # normalize -> GAP -> Linear -> mask contract is implemented here.
    mean = jax.random.uniform(km, (C,), dtype=jnp.float32, minval=0.3, maxval=0.6)
    std = jax.random.uniform(ks, (C,), dtype=jnp.float32, minval=0.2, maxval=0.3)
    w = jax.random.normal(kw, (C, NUM_CLASSES), dtype=jnp.float32) * 0.1
    b = jax.random.normal(kb, (NUM_CLASSES,), dtype=jnp.float32) * 0.01

    # ImageNet-X style class-index mask (fixed, deterministic).
    mask = jnp.array([1, 3, 5, 8, 13, 21, 2, 30], dtype=jnp.int32)

    # Small demo blocks so the grid has >1 HW tile and exercises the
    # init/accumulate/finalize path (production defaults: block_bg=8, block_hw=25088).
    forward = make_imagenetx_forward(mean, std, w, b, mask, x.shape, x.dtype,
                                     block_bg=1, block_hw=128)
    out = jax.block_until_ready(forward(x))

    # Pure-JAX reference of the original (un-folded) forward semantics.
    xn_ref = (x - mean.reshape(1, C, 1, 1)) / std.reshape(1, C, 1, 1)
    pooled_ref = xn_ref.mean(axis=(2, 3))
    logits_ref = pooled_ref @ w + b
    ref = logits_ref[:, mask]

    assert out.shape == (B, mask.shape[0])
    assert jnp.allclose(out, ref, atol=1e-4, rtol=1e-4), float(
        jnp.max(jnp.abs(out - ref)))

    print("KERNEL_OK")
</pallas_src>

<mosaic_0001>
module attributes {stable_mosaic.version = 11 : i64} {
  func.func @_imagenetx_kernel(%arg0: i32, %arg1: i32, %arg2: memref<1x8x128xf32, #tpu.memory_space<vmem>>, %arg3: memref<8x256xf32, #tpu.memory_space<vmem>>, %arg4: memref<1x256xf32, #tpu.memory_space<vmem>>, %arg5: memref<1x256xf32, #tpu.memory_space<vmem>>, %arg6: memref<1x8xf32, #tpu.memory_space<vmem>>) attributes {dimension_semantics = [#tpu.dimension_semantics<parallel>, #tpu.dimension_semantics<arbitrary>], iteration_bounds = array<i64: 1, 2>, scalar_prefetch = 0 : i64, scratch_operands = 1 : i64, tpu.core_type = #tpu.core_type<tc>, window_params = [{transform_indices = @transform_0, window_bounds = array<i64: 1, 8, 128>}, {pipeline_mode = #tpu.pipeline_mode<synchronous>, transform_indices = @transform_1, window_bounds = array<i64: 8, 256>}, {pipeline_mode = #tpu.pipeline_mode<synchronous>, transform_indices = @transform_2, window_bounds = array<i64: 1, 256>}, {transform_indices = @transform_3, window_bounds = array<i64: 1, 256>}]} {
    %c0_i32 = arith.constant 0 : i32
    %0 = arith.cmpi eq, %arg1, %c0_i32 : i32
    %1 = arith.extui %0 : i1 to i32
    %c0_i32_0 = arith.constant 0 : i32
    %2 = arith.cmpi ne, %1, %c0_i32_0 : i32
    scf.if %2 {
      %cst_8 = arith.constant 0.000000e+00 : f32
      %11 = vector.broadcast %cst_8 : f32 to vector<1x8xf32>
      %c0_9 = arith.constant 0 : index
      %c0_10 = arith.constant 0 : index
      %12 = vector.load %arg6[%c0_9, %c0_10] : memref<1x8xf32, #tpu.memory_space<vmem>>, vector<1x8xf32>
      tpu.vector_store %arg6[%c0_9, %c0_10], %11 {strides = array<i32>} : memref<1x8xf32, #tpu.memory_space<vmem>>, vector<1x8xf32>,
    } else {
    }
    %c0 = arith.constant 0 : index
    %c0_1 = arith.constant 0 : index
    %3 = vector.load %arg6[%c0, %c0_1] : memref<1x8xf32, #tpu.memory_space<vmem>>, vector<1x8xf32>
    %c0_2 = arith.constant 0 : index
    %c0_3 = arith.constant 0 : index
    %c0_4 = arith.constant 0 : index
    %4 = vector.load %arg2[%c0_2, %c0_3, %c0_4] : memref<1x8x128xf32, #tpu.memory_space<vmem>>, vector<1x8x128xf32>
    %cst = arith.constant dense<0.000000e+00> : vector<1x8xf32>
    %5 = vector.multi_reduction <add>, %4, %cst [2] : vector<1x8x128xf32> to vector<1x8xf32>
    %6 = arith.addf %3, %5 : vector<1x8xf32>
    %c0_5 = arith.constant 0 : index
    %c0_6 = arith.constant 0 : index
    %7 = vector.load %arg6[%c0_5, %c0_6] : memref<1x8xf32, #tpu.memory_space<vmem>>, vector<1x8xf32>
    tpu.vector_store %arg6[%c0_5, %c0_6], %6 {strides = array<i32>} : memref<1x8xf32, #tpu.memory_space<vmem>>, vector<1x8xf32>,
    %c1_i32 = arith.constant 1 : i32
    %8 = arith.cmpi eq, %arg1, %c1_i32 : i32
    %9 = arith.extui %8 : i1 to i32
    %c0_i32_7 = arith.constant 0 : i32
    %10 = arith.cmpi ne, %9, %c0_i32_7 : i32
    scf.if %10 {
      %c0_8 = arith.constant 0 : index
      %c0_9 = arith.constant 0 : index
      %11 = vector.load %arg6[%c0_8, %c0_9] : memref<1x8xf32, #tpu.memory_space<vmem>>, vector<1x8xf32>
      %c0_10 = arith.constant 0 : index
      %c0_11 = arith.constant 0 : index
      %12 = vector.load %arg3[%c0_10, %c0_11] : memref<8x256xf32, #tpu.memory_space<vmem>>, vector<8x256xf32>
      %cst_12 = arith.constant dense<0.000000e+00> : vector<1x256xf32>
      %13 = tpu.matmul %11, %12, %cst_12 {dimension_numbers = #tpu.dot_dimension_numbers<[1], [0], [0], [1], [0, 0, 1, 1], [], []>} : vector<1x8xf32>, vector<8x256xf32>, vector<1x256xf32> -> vector<1x256xf32>
      %c0_13 = arith.constant 0 : index
      %c0_14 = arith.constant 0 : index
      %14 = vector.load %arg4[%c0_13, %c0_14] : memref<1x256xf32, #tpu.memory_space<vmem>>, vector<1x256xf32>
      %15 = arith.addf %13, %14 : vector<1x256xf32>
      %c0_15 = arith.constant 0 : index
      %c0_16 = arith.constant 0 : index
      %16 = vector.load %arg5[%c0_15, %c0_16] : memref<1x256xf32, #tpu.memory_space<vmem>>, vector<1x256xf32>
      tpu.vector_store %arg5[%c0_15, %c0_16], %15 {strides = array<i32>} : memref<1x256xf32, #tpu.memory_space<vmem>>, vector<1x256xf32>,
    } else {
    }
    return
  }
  func.func @transform_0(%arg0: i32, %arg1: i32) -> (i32, i32, i32) {
    %c0_i32 = arith.constant 0 : i32
    %c0_i32_0 = arith.constant 0 : i32
    return %arg0, %c0_i32, %arg1 : i32, i32, i32
  }
  func.func @transform_1(%arg0: i32, %arg1: i32) -> (i32, i32) {
    %c0_i32 = arith.constant 0 : i32
    %c0_i32_0 = arith.constant 0 : i32
    %c0_i32_1 = arith.constant 0 : i32
    return %c0_i32, %c0_i32_0 : i32, i32
  }
  func.func @transform_2(%arg0: i32, %arg1: i32) -> (i32, i32) {
    %c0_i32 = arith.constant 0 : i32
    %c0_i32_0 = arith.constant 0 : i32
    %c0_i32_1 = arith.constant 0 : i32
    return %c0_i32, %c0_i32_0 : i32, i32
  }
  func.func @transform_3(%arg0: i32, %arg1: i32) -> (i32, i32) {
    %c0_i32 = arith.constant 0 : i32
    %c0_i32_0 = arith.constant 0 : i32
    return %arg0, %c0_i32 : i32, i32
  }
}

</mosaic_0001>

<llo_original>
// kernel: forward.1
$region0: #{forward.1}
  #allocation0 [shape = 'u32[]', space=smem, size = 0x4, offset = 0x4, fixed_abs, tag = 'smem constant byte address 0x4 - core index']
  #allocation1 [shape = 'u32[144,128]{1,0:T(1,128)}', space=vmem, size = 0x12000, scoped, tag = 'internal scratch']
  #allocation2 [shape = 'f32[1,8]{1,0:T(1,128)}', space=vmem, size = 0x200, scoped, tag = 'scratch operand']
  %s0 = inlined_call_operand.vmem [shape: f32[1,8,256], index: 0, kind: input, shape index: {}]
  %s1 = inlined_call_operand.vmem [shape: f32[8,256], index: 1, kind: input, shape index: {}]
  %s2 = inlined_call_operand.vmem [shape: f32[1,256], index: 2, kind: input, shape index: {}]
  %s3 = inlined_call_operand.hbm [shape: f32[1,256], index: 3, kind: output, shape index: {}]
  %s4 = sld [smem:[#allocation0]]
  $region53: #{forward.1} parent=0
    _
  %s6 = ssub.s32 1, %s4
  %s7 = scalar_select 0, %s6, %s4
  $region1: #{forward.1} parent=0
    #allocation3 [shape = 'u8[1024]{0}', space=vmem, size = 0x400, scoped, tag = 'output window, operand 0, single buffered']
    #allocation4 [shape = 's32[2]{0}', space=sflag, size = 0x8, scoped, tag = 'scoped memory for forward.1']
    %8 = vsyncpa [#allocation4], 0
    loop: start=0, step=1, limit=4
    $region2: #{forward.1} parent=1 // loop_pre_header
      _
    $region3: #{forward.1} parent=1 // loop_header
      %s10 = sphi 0, %s14
      %p11 = scmp.ge.s32.totalorder %s10, 4
      %s17 = sphi 0, %s29
      %s18 = sphi 0, %s25
      %s19 = sphi 0, %s17
      %s20 = sphi 0, %s18
      %s21 = sphi 0, %s19
      %s22 = sphi 0, %s20
      %s34 = sphi 0, %s36
      %s37 = sphi 0, %s34
      %s38 = sphi 0, %s37
      %s54 = sphi 0, %s38
      %s58 = sphi 0, %s58
      %s60 = sphi 0, %s58
      %s61 = sphi 0, %s60
      %s75 = sphi 0, %s61
      %s79 = sphi 0, %s79
      %s81 = sphi 0, %s79
      %s82 = sphi 0, %s81
      %s96 = sphi 0, %s82
      %s102 = sphi 0, %s104
      %s105 = sphi 0, %s102
      %s106 = sphi 0, %s105
      %s122 = sphi 0, %s106
    $region4: #{forward.1} parent=1 // loop_header_branch
      %13 = sbr.rel (%p11) target = $region8
    $region5: #{forward.1} parent=1 // loop_body
      %s15 = ssub.s32 %s10, 1
      %s16 = ssub.s32 %s10, 2
      %s23 = sadd.s32 1, %s18
      %p24 = scmp.ge.s32.totalorder %s23, 2
      %s25 = scalar_select %p24, 0, %s23
      %s26 = sadd.s32 1, %s17
      %s27 = scalar_select %p24, %s26, %s17
      %p28 = scmp.ge.s32.totalorder %s27, 1
      %s29 = scalar_select %p28, 0, %s27
      %s30 = ssub.s32 %s17, %s29
      %s31 = ssub.s32 %s18, %s25
      %s32 = sor.u32 %s30, %s31
      %p33 = scmp.eq.s32.totalorder %s32, 0
      %s35 = sadd.s32 %s34, 1
      %s36 = scalar_select %p33, %s34, %s35
      %p39 = pneg %p33
      %p40 = scmp.eq.s32.totalorder %s10, 1
      %p41 = por %p39, %p40
      %p42 = scmp.ne.s32.totalorder %s34, %s37
      %p43 = scmp.eq.s32.totalorder %s10, 0
      %p44 = por %p42, %p43
      %p45 = scmp.ne.s32.totalorder %s34, %s37
      %p46 = scmp.eq.s32.totalorder %s15, 1
      %p47 = por %p45, %p46
      %p48 = scmp.ne.s32.totalorder %s37, %s38
      %p49 = scmp.eq.s32.totalorder %s15, 0
      %p50 = por %p48, %p49
      %p51 = scmp.ne.s32.totalorder %s37, %s38
      %p52 = scmp.eq.s32.totalorder %s16, 1
      %p53 = por %p51, %p52
      %p55 = scmp.ne.s32.totalorder %s38, %s54
      %p56 = scmp.eq.s32.totalorder %s16, 0
      %p57 = por %p55, %p56
      %s59 = sadd.s32 %s58, 1
      %p62 = scmp.eq.s32.totalorder %s10, 1
      %p63 = scmp.ne.s32.totalorder %s58, %s60
      %p64 = scmp.eq.s32.totalorder %s10, 0
      %p65 = por %p63, %p64
      %p66 = scmp.ne.s32.totalorder %s58, %s60
      %p67 = scmp.eq.s32.totalorder %s15, 1
      %p68 = por %p66, %p67
      %p69 = scmp.ne.s32.totalorder %s60, %s61
      %p70 = scmp.eq.s32.totalorder %s15, 0
      %p71 = por %p69, %p70
      %p72 = scmp.ne.s32.totalorder %s60, %s61
      %p73 = scmp.eq.s32.totalorder %s16, 1
      %p74 = por %p72, %p73
      %p76 = scmp.ne.s32.totalorder %s61, %s75
      %p77 = scmp.eq.s32.totalorder %s16, 0
      %p78 = por %p76, %p77
      %s80 = sadd.s32 %s79, 1
      %p83 = scmp.eq.s32.totalorder %s10, 1
      %p84 = scmp.ne.s32.totalorder %s79, %s81
      %p85 = scmp.eq.s32.totalorder %s10, 0
      %p86 = por %p84, %p85
      %p87 = scmp.ne.s32.totalorder %s79, %s81
      %p88 = scmp.eq.s32.totalorder %s15, 1
      %p89 = por %p87, %p88
      %p90 = scmp.ne.s32.totalorder %s81, %s82
      %p91 = scmp.eq.s32.totalorder %s15, 0
      %p92 = por %p90, %p91
      %p93 = scmp.ne.s32.totalorder %s81, %s82
      %p94 = scmp.eq.s32.totalorder %s16, 1
      %p95 = por %p93, %p94
      %p97 = scmp.ne.s32.totalorder %s82, %s96
      %p98 = scmp.eq.s32.totalorder %s16, 0
      %p99 = por %p97, %p98
      %s100 = ssub.s32 %s17, %s29
      %p101 = scmp.eq.s32.totalorder %s100, 0
      %s103 = sadd.s32 %s102, 1
      %s104 = scalar_select %p101, %s102, %s103
      %p107 = pneg %p101
      %p108 = scmp.eq.s32.totalorder %s10, 1
      %p109 = por %p107, %p108
      %p110 = scmp.ne.s32.totalorder %s102, %s105
      %p111 = scmp.eq.s32.totalorder %s10, 0
      %p112 = por %p110, %p111
      %p113 = scmp.ne.s32.totalorder %s102, %s105
      %p114 = scmp.eq.s32.totalorder %s15, 1
      %p115 = por %p113, %p114
      %p116 = scmp.ne.s32.totalorder %s105, %s106
      %p117 = scmp.eq.s32.totalorder %s15, 0
      %p118 = por %p116, %p117
      %p119 = scmp.ne.s32.totalorder %s105, %s106
      %p120 = scmp.eq.s32.totalorder %s16, 1
      %p121 = por %p119, %p120
      %p123 = scmp.ne.s32.totalorder %s106, %s122
      %p124 = scmp.eq.s32.totalorder %s16, 0
      %p125 = por %p123, %p124
      %p126 = scmp.le.s32.totalorder 1, %s10
      %p127 = scmp.lt.s32.totalorder %s10, 3
      %p128 = pnand %p126, %p127
      %p129 = pneg %p128
      // Predicated region
      $region9: #{forward.1} parent=5 // pred_check
        _
      $region10: #{forward.1} parent=5 // pred_check_branch
        %131 = sbr.rel (%p128) target = $region12
      $region11: #{forward.1} parent=5 // pred_region
        %s132 = ssub.s32 %s10, 1
        // Predicated region
        $region13: #{forward.1} parent=11 // pred_check
          %p133 = pneg %p71
        $region14: #{forward.1} parent=11 // pred_check_branch
          %135 = sbr.rel (%p133) target = $region16
        $region15: #{forward.1} parent=11 // pred_region
          _
        $region16: #{forward.1} parent=11 // pred_fallthru
          _
        // Predicated region
        $region17: #{forward.1} parent=11 // pred_check
          %p136 = pneg %p92
        $region18: #{forward.1} parent=11 // pred_check_branch
          %138 = sbr.rel (%p136) target = $region20
        $region19: #{forward.1} parent=11 // pred_region
          _
        $region20: #{forward.1} parent=11 // pred_fallthru
          _
      $region12: #{forward.1} parent=5 // pred_fallthru
        _
      %p139 = scmp.lt.s32.totalorder %s10, 2
      // Predicated region
      $region21: #{forward.1} parent=5 // pred_check
        %p140 = pneg %p139
      $region22: #{forward.1} parent=5 // pred_check_branch
        %142 = sbr.rel (%p140) target = $region24
      $region23: #{forward.1} parent=5 // pred_region
        // Predicated region
        $region25: #{forward.1} parent=23 // pred_check
          %p143 = pneg %p44
        $region26: #{forward.1} parent=23 // pred_check_branch
          %145 = sbr.rel (%p143) target = $region28
        $region27: #{forward.1} parent=23 // pred_region
          %p146 = scmp.lt.s32.totalorder %s17, 0
          %s147 = scalar_select %p146, %s17, 0
          %p148 = scmp.lt.s32.totalorder %s18, 1
          %s149 = scalar_select %p148, %s18, 1
          %s150 = smul.addr %s147, 2
          %s151 = sadd.s32 %s149, %s150
          %s152 = smul.addr %s151, 8
          %s153 = scalar_lea.vmem %s0, %s152
        $region28: #{forward.1} parent=23 // pred_fallthru
          _
      $region24: #{forward.1} parent=5 // pred_fallthru
        _
      %p154 = scmp.le.s32.totalorder 1, %s10
      %p155 = scmp.lt.s32.totalorder %s10, 3
      %p156 = pnand %p154, %p155
      %p157 = pneg %p156
      // Predicated region
      $region29: #{forward.1} parent=5 // pred_check
        _
      $region30: #{forward.1} parent=5 // pred_check_branch
        %159 = sbr.rel (%p156) target = $region32
      $region31: #{forward.1} parent=5 // pred_region
        %s160 = ssub.s32 %s10, 1
        %p161 = scmp.lt.s32.totalorder %s19, 0
        %s162 = scalar_select %p161, %s19, 0
        %p163 = scmp.lt.s32.totalorder %s20, 1
        %s164 = scalar_select %p163, %s20, 1
        %s165 = smul.addr %s162, 2
        %s166 = sadd.s32 %s164, %s165
        %s167 = smul.addr %s166, 8
        %s168 = scalar_lea.vmem %s0, %s167
        %p169 = pneg %p50
        %p170 = pneg %p47
        %p171 = pneg %p71
        %p172 = pneg %p68
        %p173 = pneg %p92
        %p174 = pneg %p89
        %p175 = pneg %p118
        %p176 = pneg %p115
        %p177 = scmp.lt.s32.totalorder %s19, 0
        %s178 = scalar_select %p177, %s19, 0
        %p179 = scmp.lt.s32.totalorder %s20, 1
        %s180 = scalar_select %p179, %s20, 1
        %s181 = smul.addr %s178, 2
        %s182 = sadd.s32 %s180, %s181
        %s183 = smul.addr %s182, 8
        %s184 = scalar_lea.vmem %s0, %s183
        %p185 = scmp.eq.s32.totalorder %s20, 0
        // Predicated region
        $region33: #{forward.1} parent=31 // pred_check
          %p186 = pneg %p185
        $region34: #{forward.1} parent=31 // pred_check_branch
          %188 = sbr.rel (%p186) target = $region36
        $region35: #{forward.1} parent=31 // pred_region
          %vm189 = vcmask 57344
          %190 = vst.msk [vmem:[#allocation2] sm:$0x1] %vm189, 0.0
        $region36: #{forward.1} parent=31 // pred_fallthru
          _
        %v191 = vld [vmem:[#allocation2] sm:$0x1]
        %v192 = vld [vmem:[%s184] sm:$0xff]
        %193 = vadd.xlane.f32.xlu0 %v192
        %v194 = vpop.xlane.xlu0 %193
        %v196 = vlaneseq
        %v197 = vshrl.u32 %v196, 7
        %v198 = vsub.s32 0, %v197
        %v199 = vrot.slane %v194, %v198
        %v200 = vlaneseq
        %v201 = vshrl.u32 %v200, 7
        %v202 = vsub.s32 1, %v201
        %v203 = vrot.slane %v194, %v202
        %v204 = vlaneseq
        %v205 = vshrl.u32 %v204, 7
        %v206 = vsub.s32 2, %v205
        %v207 = vrot.slane %v194, %v206
        %v208 = vlaneseq
        %v209 = vshrl.u32 %v208, 7
        %v210 = vsub.s32 3, %v209
        %v211 = vrot.slane %v194, %v210
        %v212 = vlaneseq
        %v213 = vshrl.u32 %v212, 7
        %v214 = vsub.s32 4, %v213
        %v215 = vrot.slane %v194, %v214
        %v216 = vlaneseq
        %v217 = vshrl.u32 %v216, 7
        %v218 = vsub.s32 5, %v217
        %v219 = vrot.slane %v194, %v218
        %v220 = vlaneseq
        %v221 = vshrl.u32 %v220, 7
        %v222 = vsub.s32 6, %v221
        %v223 = vrot.slane %v194, %v222
        %v224 = vlaneseq
        %v225 = vshrl.u32 %v224, 7
        %v226 = vsub.s32 7, %v225
        %v227 = vrot.slane %v194, %v226
        %v228 = vcombine.low %v199, %v203
        %v229 = vcombine.low %v207, %v211
        %v230 = vcombine.low %v215, %v219
        %v231 = vcombine.low %v223, %v227
        %v233 = vunpack.c.l.s4 1966171168
        %v234 = vunpack.c.0.s8 %v233
        %v235 = vlaneseq
        %v236 = vshrl.u32 %v235, 7
        %v237 = vsub.s32 %v234, %v236
        %v238 = vrot.slane %v228, %v237
        %v240 = vunpack.c.l.s4 1966171168
        %v241 = vunpack.c.0.s8 %v240
        %v242 = vlaneseq
        %v243 = vshrl.u32 %v242, 7
        %v244 = vsub.s32 %v241, %v243
        %v245 = vrot.slane %v229, %v244
        %v247 = vunpack.c.l.s4 1966171168
        %v248 = vunpack.c.0.s8 %v247
        %v249 = vlaneseq
        %v250 = vshrl.u32 %v249, 7
        %v251 = vsub.s32 %v248, %v250
        %v252 = vrot.slane %v230, %v251
        %v254 = vunpack.c.l.s4 1966171168
        %v255 = vunpack.c.0.s8 %v254
        %v256 = vlaneseq
        %v257 = vshrl.u32 %v256, 7
        %v258 = vsub.s32 %v255, %v257
        %v259 = vrot.slane %v231, %v258
        %v260 = vcombine.low %v238, %v245
        %v261 = vcombine.low %v252, %v259
        %v263 = vunpack.c.l.s4 1966171168
        %v264 = vunpack.c.0.s8 %v263
        %v265 = vlaneseq
        %v266 = vshrl.u32 %v265, 7
        %v267 = vsub.s32 %v264, %v266
        %v268 = vrot.slane %v260, %v267
        %v270 = vunpack.c.l.s4 1966171168
        %v271 = vunpack.c.0.s8 %v270
        %v272 = vlaneseq
        %v273 = vshrl.u32 %v272, 7
        %v274 = vsub.s32 %v271, %v273
        %v275 = vrot.slane %v261, %v274
        %v276 = vcombine.low %v268, %v275
        %277 = vset.pattern.permute.xlu0 0
        %278 = vperm.xlu0 %277, %v276
        %v279 = vpop.permute.xlu0 %278
        %v280 = vlaneseq
        %v281 = vand.u32 %v280, 127
        %v282 = vlaneseq
        %v283 = vshrl.u32 %v282, 7
        %v284 = vsub.s32 %v281, %v283
        %v285 = vrot.slane %v279, %v284
        %v287 = vunpack.c.l.s4 1966171168
        %v288 = vunpack.c.0.s8 %v287
        %v289 = vlaneseq
        %v290 = vshrl.u32 %v289, 7
        %v291 = vsub.s32 %v288, %v290
        %v292 = vrot.slane %v285, %v291
        %v294 = vunpack.c.l.s4 1966171168
        %v295 = vunpack.c.0.s8 %v294
        %v296 = vlaneseq
        %v297 = vshrl.u32 %v296, 7
        %v298 = vsub.s32 %v295, %v297
        %v299 = vrot.slane %v292, %v298
        %v301 = vadd.f32 %v191, %v299
        %vm302 = vcmask 57344
        %303 = vst.msk [vmem:[#allocation2] sm:$0x1] %vm302, %v301
        %p304 = scmp.eq.s32.totalorder %s20, 1
        // Predicated region
        $region37: #{forward.1} parent=31 // pred_check
          %p305 = pneg %p304
        $region38: #{forward.1} parent=31 // pred_check_branch
          %307 = sbr.rel (%p305) target = $region40
        $region39: #{forward.1} parent=31 // pred_region
          %v308 = vld [vmem:[#allocation2] sm:$0x1]
          %v309 = vld [vmem:[%s1] sm:$0xff]
          %v310 = vld [vmem:[%s1 + $0x8] sm:$0xff]
          %v311 = vld [vmem:[%s2] sm:$0x3]
          %v313 = vlaneseq
          %v314 = vshrl.u32 %v313, 7
          %v315 = vsub.s32 0, %v314
          %v316 = vrot.slane %v311, %v315
          %v317 = vlaneseq
          %v318 = vshrl.u32 %v317, 7
          %v319 = vsub.s32 1, %v318
          %v320 = vrot.slane %v311, %v319
          %vm323 = vcmask 64512
          %v325 = vsel %vm323, %v308, 0
          %327 = vmatprep.subr.mxu0 %v310
          %328 = vmatpush1.msra.mxu0 %v309
          %329 = vmatprep.subr.mxu0 0.0
          %330 = vmatpush1.msra.mxu0 0.0
          %331 = vmatprep.subr.mxu0 0.0
          %332 = vmatpush1.msra.mxu0 0.0
          %333 = vmatprep.subr.mxu0 0.0
          %334 = vmatpush1.msra.mxu0 0.0
          %335 = vmatprep.subr.mxu0 0.0
          %336 = vmatpush1.msra.mxu0 0.0
          %337 = vmatprep.subr.mxu0 0.0
          %338 = vmatpush1.msra.mxu0 0.0
          %339 = vmatprep.subr.mxu0 0.0
          %340 = vmatpush1.msra.mxu0 0.0
          %341 = vmatprep.subr.mxu0 0.0
          %342 = vmatpush1.msra.mxu0 0.0
          %343 = vmatprep.subr.mxu0 0.0
          %344 = vmatpush1.msra.mxu0 0.0
          %345 = vmatprep.subr.mxu0 0.0
          %346 = vmatpush1.msra.mxu0 0.0
          %347 = vmatprep.subr.mxu0 0.0
          %348 = vmatpush1.msra.mxu0 0.0
          %349 = vmatprep.subr.mxu0 0.0
          %350 = vmatpush1.msra.mxu0 0.0
          %351 = vmatprep.subr.mxu0 0.0
          %352 = vmatpush1.msra.mxu0 0.0
          %353 = vmatprep.subr.mxu0 0.0
          %354 = vmatpush1.msra.mxu0 0.0
          %355 = vmatprep.subr.mxu0 0.0
          %356 = vmatpush1.msra.mxu0 0.0
          %357 = vmatprep.subr.mxu0 0.0
          %358 = vmatpush1.msra.mxu0 0.0
          %359 = vmatprep.subr.mxu0 0.0
          %360 = vmatpush1.msra.mxu0 0.0
          %361 = vmatprep.subr.mxu0 0.0
          %362 = vmatpush1.msra.mxu0 0.0
          %363 = vmatprep.subr.mxu0 0.0
          %364 = vmatpush1.msra.mxu0 0.0
          %365 = vmatprep.subr.mxu0 0.0
          %366 = vmatpush1.msra.mxu0 0.0
          %367 = vmatprep.subr.mxu0 0.0
          %368 = vmatpush1.msra.mxu0 0.0
          %369 = vmatprep.subr.mxu0 0.0
          %370 = vmatpush1.msra.mxu0 0.0
          %371 = vmatprep.subr.mxu0 0.0
          %372 = vmatpush1.msra.mxu0 0.0
          %373 = vmatprep.subr.mxu0 0.0
          %374 = vmatpush1.msra.mxu0 0.0
          %375 = vmatprep.subr.mxu0 0.0
          %376 = vmatpush1.msra.mxu0 0.0
          %377 = vmatprep.subr.mxu0 0.0
          %378 = vmatpush1.msra.mxu0 0.0
          %379 = vmatprep.subr.mxu0 0.0
          %380 = vmatpush1.msra.mxu0 0.0
          %381 = vmatprep.subr.mxu0 0.0
          %382 = vmatpush1.msra.mxu0 0.0
          %383 = vmatprep.subr.mxu0 0.0
          %384 = vmatpush1.msra.mxu0 0.0
          %385 = vmatprep.subr.mxu0 0.0
          %386 = vmatpush1.msra.mxu0 0.0
          %387 = vmatprep.subr.mxu0 0.0
          %388 = vmatpush1.msra.mxu0 0.0
          %389 = vmatprep.subr.mxu0 0.0
          %390 = vmatpush1.msra.mxu0 0.0
          %391 = vmatprep.mubr.f32.mxu0 0.0
          %392 = vmatmul.mubr.f32.gmra.mrb[0].mxu0 %v325
          %v393 = vpop.f32.mrb[0].mxu0
          %v394 = vadd.f32 %v316, %v393
          %v395 = vpop.f32.mrb[0].mxu0
          %v396 = vadd.f32 %v320, %v395
          %397 = vdwg.mxu0
          %v400 = vcombine.low %v394, %v396
          %v402 = vunpack.c.l.s4 1966171168
          %v403 = vunpack.c.0.s8 %v402
          %v404 = vlaneseq
          %v405 = vshrl.u32 %v404, 7
          %v406 = vsub.s32 %v403, %v405
          %v407 = vrot.slane %v400, %v406
          %v409 = vunpack.c.l.s4 1966171168
          %v410 = vunpack.c.0.s8 %v409
          %v411 = vlaneseq
          %v412 = vshrl.u32 %v411, 7
          %v413 = vsub.s32 %v410, %v412
          %v414 = vrot.slane %v407, %v413
          %v416 = vlaneseq
          %vm417 = vcmp.ge.s32.totalorder %v416, 0
          %vm418 = vcmp.lt.s32.totalorder %v416, 256
          %vm419 = vmand %vm417, %vm418
          %420 = vst.msk [vmem:[#allocation3] sm:$0x3] %vm419, %v414
        $region40: #{forward.1} parent=31 // pred_fallthru
          _
        // Predicated region
        $region41: #{forward.1} parent=31 // pred_check
          %p421 = pneg %p115
        $region42: #{forward.1} parent=31 // pred_check_branch
          %423 = sbr.rel (%p421) target = $region44
        $region43: #{forward.1} parent=31 // pred_region
          %s425 = ssub.s32 32, 32
          %426 = vsyncadd [#allocation4], %s425
          %s427 = smul.addr %s19, 2
          %s428 = smul.addr %s427, 16
          %s429 = scalar_lea.hbm %s3, %s428
          %s431 = sshll.u32 [#allocation3], 4
          %s432 = int_to_ptr.vmem [resolvable:$true] %s431
          %434 = dma.vmem_to_hbm [thread:$0]  %s432, 32, %s429, [#allocation4]
        $region44: #{forward.1} parent=31 // pred_fallthru
          _
        // Predicated region
        $region45: #{forward.1} parent=31 // pred_check
          %p435 = pneg %p115
        $region46: #{forward.1} parent=31 // pred_check_branch
          %437 = sbr.rel (%p435) target = $region48
        $region47: #{forward.1} parent=31 // pred_region
          %438 = dma.done [#allocation4], 32
        $region48: #{forward.1} parent=31 // pred_fallthru
          _
      $region32: #{forward.1} parent=5 // pred_fallthru
        _
      %p439 = scmp.le.s32.totalorder 2, %s10
      // Predicated region
      $region49: #{forward.1} parent=5 // pred_check
        %p440 = pneg %p439
      $region50: #{forward.1} parent=5 // pred_check_branch
        %442 = sbr.rel (%p440) target = $region52
      $region51: #{forward.1} parent=5 // pred_region
        %s443 = ssub.s32 %s10, 2
      $region52: #{forward.1} parent=5 // pred_fallthru
        _
    $region6: #{forward.1} parent=1 // loop_footer
      %s14 = sadd.s32 1, %s10
    $region7: #{forward.1} parent=1 // loop_footer_branch
      %9 = sbr.rel target = $region3
    $region8: #{forward.1} parent=1 // loop_exit
      _
    %444 = vsyncpa [#allocation4], 1
    %s445 = scalar_lea.sflag [#allocation4], 1
    %446 = vsyncpa %s445, 1

</llo_original>
